<compile_context>
chip_gen: v7x
topology: tpu7x:2x2x1
jax: 0.10.0
libtpu: 0.0.40
codegen_flags: <defaults>
</compile_context>

<pallas_src>
import jax
import jax.numpy as jnp
from jax.experimental import pallas as pl
from jax.experimental.pallas import tpu as pltpu

_CHUNK_BYTES = 4 * 1024 * 1024   # only split into concurrent DMAs above this size
_MAX_CHUNKS = 4                  # a handful of concurrent DMA descriptors


def _make_identity_dma_kernel(chunk_bounds):
    """Build an HBM->HBM copy kernel: one async DMA per static leading-axis chunk."""
    n_chunks = len(chunk_bounds) - 1

    def kernel(x_hbm_ref, o_hbm_ref, sems):
        if n_chunks == 1:
            cp = pltpu.make_async_copy(x_hbm_ref, o_hbm_ref, sems.at[0])
            cp.start()
            cp.wait()
        else:
            copies = []
            for c in range(n_chunks):
                start = chunk_bounds[c]
                size = chunk_bounds[c + 1] - start
                cp = pltpu.make_async_copy(
                    x_hbm_ref.at[pl.ds(start, size)],
                    o_hbm_ref.at[pl.ds(start, size)],
                    sems.at[c],
                )
                cp.start()
                copies.append(cp)
            for cp in copies:
                cp.wait()

    return kernel


def direct_connect(x):
    """Identity forward pass of DirectConnectModule via a direct HBM->HBM DMA."""
    if x.size == 0:
        return x

    itemsize = jnp.dtype(x.dtype).itemsize
    total_bytes = x.size * itemsize

    # Static (trace-time) decision: one DMA for small tensors, up to _MAX_CHUNKS
    # concurrent chunk DMAs along the leading axis for large ones.
    if total_bytes >= _CHUNK_BYTES and x.ndim >= 1 and x.shape[0] >= 2:
        n_chunks = min(_MAX_CHUNKS, x.shape[0])
    else:
        n_chunks = 1
    lead = x.shape[0] if x.ndim >= 1 else 1
    chunk_bounds = tuple((lead * c) // n_chunks for c in range(n_chunks + 1))

    kernel = _make_identity_dma_kernel(chunk_bounds)

    out = pl.pallas_call(
        kernel,
        out_shape=jax.ShapeDtypeStruct(x.shape, x.dtype),
        in_specs=[pl.BlockSpec(memory_space=pl.ANY)],
        out_specs=pl.BlockSpec(memory_space=pl.ANY),
        scratch_shapes=[pltpu.SemaphoreType.DMA((n_chunks,))],
        cost_estimate=pl.CostEstimate(
            flops=0, transcendentals=0, bytes_accessed=2 * total_bytes
        ),
    )(x)
    return out


if __name__ == "__main__":
    key = jax.random.PRNGKey(0)

    # Primary small NCHW input consistent with the module: (2, 4, 16, 16) f32.
    x = jax.random.normal(key, (2, 4, 16, 16), dtype=jnp.float32)
    y = jax.block_until_ready(direct_connect(x))
    assert y.shape == x.shape and y.dtype == x.dtype
    assert bool(jnp.all(y == x)), "identity mismatch (main)"

    k1, k2, k3 = jax.random.split(key, 3)

    # Element count not divisible by 128: no special casing needed for the DMA path.
    x2 = jax.random.normal(k1, (1, 1, 5, 1000), dtype=jnp.float32)
    y2 = jax.block_until_ready(direct_connect(x2))
    assert y2.shape == x2.shape and bool(jnp.all(y2 == x2)), "identity mismatch (ragged)"

    # Larger tensor (~6.5 MiB): exercises the concurrent chunked-DMA path.
    x3 = jax.random.normal(k2, (16, 8, 100, 128), dtype=jnp.float32)
    y3 = jax.block_until_ready(direct_connect(x3))
    assert y3.shape == x3.shape and bool(jnp.all(y3 == x3)), "identity mismatch (chunked)"

    # bf16 (sub-32-bit dtype): the raw DMA is layout/packing agnostic.
    x4 = jax.random.normal(k3, (2, 4, 16, 16), dtype=jnp.bfloat16)
    y4 = jax.block_until_ready(direct_connect(x4))
    assert y4.shape == x4.shape and y4.dtype == x4.dtype
    assert bool(jnp.all(y4 == x4)), "identity mismatch (bf16)"

    print("KERNEL_OK")
</pallas_src>

<mosaic_0001>
module attributes {stable_mosaic.version = 11 : i64} {
  func.func @kernel(%arg0: memref<2x4x16x16xf32, #tpu.memory_space<any>>, %arg1: memref<2x4x16x16xf32, #tpu.memory_space<any>>, %arg2: memref<1x!tpu.dma_semaphore, #tpu.memory_space<semaphore_mem>>) attributes {dimension_semantics = [], scalar_prefetch = 0 : i64, scratch_operands = 1 : i64, tpu.core_type = #tpu.core_type<tc>} {
    %c0_i32 = arith.constant 0 : i32
    %0 = tpu.memref_slice %arg2[%c0_i32] : memref<1x!tpu.dma_semaphore, #tpu.memory_space<semaphore_mem>> -> memref<1x!tpu.dma_semaphore, #tpu.memory_space<semaphore_mem>>
    %1 = tpu.memref_squeeze %0 : memref<1x!tpu.dma_semaphore, #tpu.memory_space<semaphore_mem>> -> memref<!tpu.dma_semaphore, #tpu.memory_space<semaphore_mem>>
    tpu.enqueue_dma source(%arg0 : memref<2x4x16x16xf32, #tpu.memory_space<any>>) target(%arg1 : memref<2x4x16x16xf32, #tpu.memory_space<any>>) target_semaphore(%1 : memref<!tpu.dma_semaphore, #tpu.memory_space<semaphore_mem>>)
    %c0_i32_0 = arith.constant 0 : i32
    %2 = tpu.memref_slice %arg2[%c0_i32_0] : memref<1x!tpu.dma_semaphore, #tpu.memory_space<semaphore_mem>> -> memref<1x!tpu.dma_semaphore, #tpu.memory_space<semaphore_mem>>
    %3 = tpu.memref_squeeze %2 : memref<1x!tpu.dma_semaphore, #tpu.memory_space<semaphore_mem>> -> memref<!tpu.dma_semaphore, #tpu.memory_space<semaphore_mem>>
    tpu.wait_dma2 semaphore(%3 : memref<!tpu.dma_semaphore, #tpu.memory_space<semaphore_mem>>) src(%arg0 : memref<2x4x16x16xf32, #tpu.memory_space<any>>) dst(%arg1 : memref<2x4x16x16xf32, #tpu.memory_space<any>>)
    return
  }
}

</mosaic_0001>

<llo_original>
// kernel: tpu_custom_call.1
$region0: #{tpu_custom_call.1}
  #allocation0 [shape = 'u32[]', space=smem, size = 0x4, offset = 0x4, fixed_abs, tag = 'smem constant byte address 0x4 - core index']
  #allocation1 [shape = 'u32[144,128]{1,0:T(1,128)}', space=vmem, size = 0x12000, scoped, tag = 'internal scratch']
  #allocation2 [shape = 's32[1]{0}', space=sflag, size = 0x4, scoped, tag = 'scratch operand']
  #allocation3 [shape = 's32[]', space=sflag, size = 0x4, offset = 0, fixed_abs, tag = 'sflag constant byte address 0x0 - dummy sync flag']
  #allocation4 [shape = 'u32[0]{0}', space=smem, size = 0, offset = 0, fixed_abs, tag = 'smem constant byte address 0x0 - null']
  %s0 = inlined_call_operand.hbm [shape: f32[2,4,16,16], index: 0, kind: input, shape index: {}]
  %s1 = inlined_call_operand.hbm [shape: f32[2,4,16,16], index: 1, kind: output, shape index: {}]
  %s2 = sld [smem:[#allocation0]]
  $region2: #{tpu_custom_call.1} parent=0
    _
  %s4 = ssub.s32 1, %s2
  %s5 = scalar_select 0, %s4, %s2
  %s7 = sshll.u32 1, 14
  %s8 = sxor.u32 4294967295, %s7
  %s11 = sshll.u32 3, 24
  %s12 = sxor.u32 4294967295, %s11
  %s13 = sand.u32 0, %s12
  %s15 = sor.u32 %s13, 0
  %18 = dma.general %s0, 2048, %s1, [#allocation2], [#allocation3], [#allocation4], %s15, 0
  %s19 = smul.u32 2, 4
  %s20 = smul.u32 %s19, 16
  %s21 = smul.u32 %s20, 1
  %s22 = sshll.u32 %s21, 4
  %23 = dma.done [#allocation2], %s22
  %24 = vsyncmov [#allocation2]
  %s25 = vpop.sfrf %24
  %p26 = scmp.eq.s32.totalorder %s25, 0
  %p27 = pneg %p26
  %29 = shalt.err (%p27)

</llo_original>
